<compile_context>
chip_gen: v5e
topology: v5e:2x2
jax: 0.10.0
libtpu: 0.0.40
codegen_flags: <defaults>
</compile_context>

<pallas_src>
import functools

import jax
import jax.numpy as jnp
from jax import lax
from jax.experimental import pallas as pl
from jax.experimental.pallas import tpu as pltpu

LANE = 128
SUB = 8


def _poisson_kernel(seed_ref, x_ref, o_ref, *, rescale_fac, block_rows):
    # --- counter-based per-element RNG (splitmix32 / lowbias32 hash) --------
    i = pl.program_id(0)
    shape = x_ref.shape  # (block_rows, LANE), static

    row = lax.broadcasted_iota(jnp.int32, shape, 0)
    col = lax.broadcasted_iota(jnp.int32, shape, 1)
    gidx = (i * block_rows + row) * LANE + col          # global element index

    z = gidx.astype(jnp.uint32) + seed_ref[0].astype(jnp.uint32)
    z = (z ^ (z >> 16)) * jnp.uint32(0x7FEB352D)
    z = (z ^ (z >> 15)) * jnp.uint32(0x846CA68B)
    z = z ^ (z >> 16)

    # Mantissa trick: top 23 bits -> float in [1, 2), minus 1 -> U[0, 1).
    u = lax.bitcast_convert_type((z >> 9) | jnp.uint32(0x3F800000),
                                 jnp.float32) - jnp.float32(1.0)

    # --- spike = (u * rescale <= |x|) * sign(x), fused into selects ---------
    x = x_ref[...]
    cond = u * jnp.float32(rescale_fac) <= jnp.abs(x)
    sgn = jnp.where(x > 0, jnp.float32(1.0),
                    jnp.where(x < 0, jnp.float32(-1.0), jnp.float32(0.0)))
    o_ref[...] = jnp.where(cond, sgn, jnp.float32(0.0))


def poisson_generator(inp, rescale_fac=1.0, seed=0):
    """Pallas equivalent of PoissonGenerator()(inp, rescale_fac). Returns float32."""
    orig_shape = inp.shape
    total = int(inp.size)

    rows = pl.cdiv(total, LANE)
    rows_p = ((rows + SUB - 1) // SUB) * SUB
    padded = rows_p * LANE

    flat = jnp.ravel(inp).astype(jnp.float32)
    if padded != total:
        # Only pad when the element count is not a whole number of (8,128)
        # tiles; avoids an extra full HBM pass in the common case.
        flat = jnp.pad(flat, (0, padded - total))
    x2d = flat.reshape(rows_p, LANE)

    # ~1 MiB fp32 per in/out buffer; with double-buffering this stays well
    # under v5e's 16 MiB scoped VMEM and v7x's smaller physical VMEM.
    block_rows = min(rows_p, 2048)
    grid = pl.cdiv(rows_p, block_rows)

    kernel = functools.partial(_poisson_kernel,
                               rescale_fac=float(rescale_fac),
                               block_rows=block_rows)

    seed_arr = jnp.array([seed], dtype=jnp.int32)

    out2d = pl.pallas_call(
        kernel,
        out_shape=jax.ShapeDtypeStruct((rows_p, LANE), jnp.float32),
        grid_spec=pltpu.PrefetchScalarGridSpec(
            num_scalar_prefetch=1,  # seed (SMEM)
            grid=(grid,),
            in_specs=[pl.BlockSpec((block_rows, LANE), lambda i, seed: (i, 0))],
            out_specs=pl.BlockSpec((block_rows, LANE), lambda i, seed: (i, 0)),
        ),
        compiler_params=pltpu.CompilerParams(
            dimension_semantics=("parallel",)),
    )(seed_arr, x2d)

    if padded != total:
        return out2d.reshape(-1)[:total].reshape(orig_shape)
    return out2d.reshape(orig_shape)


if __name__ == "__main__":
    key = jax.random.PRNGKey(0)
    # Small NCHW input consistent with an SNN feature map.
    x = jax.random.normal(key, (2, 4, 16, 16), dtype=jnp.float32)

    out = poisson_generator(x, rescale_fac=1.0, seed=0)
    out = jax.block_until_ready(out)

    # Sanity checks: values in {-1, 0, +1}; nonzero spikes match sign(x).
    assert out.shape == x.shape and out.dtype == jnp.float32
    vals_ok = bool(jnp.all((out == 0.0) | (out == 1.0) | (out == -1.0)))
    sign_ok = bool(jnp.all(jnp.where(out != 0.0, out == jnp.sign(x), True)))
    assert vals_ok and sign_ok

    print("KERNEL_OK")
</pallas_src>

<mosaic_0001>
module attributes {stable_mosaic.version = 11 : i64} {
  func.func @_poisson_kernel(%arg0: i32, %arg1: memref<1xi32, #tpu.memory_space<smem>>, %arg2: memref<16x128xf32, #tpu.memory_space<vmem>>, %arg3: memref<16x128xf32, #tpu.memory_space<vmem>>) attributes {dimension_semantics = [#tpu.dimension_semantics<parallel>], iteration_bounds = array<i64: 1>, scalar_prefetch = 1 : i64, scratch_operands = 0 : i64, tpu.core_type = #tpu.core_type<tc>, window_params = [{transform_indices = @transform_0, window_bounds = array<i64: 16, 128>}, {transform_indices = @transform_1, window_bounds = array<i64: 16, 128>}]} {
    %0 = tpu.iota {dimensions = array<i32: 0>} : vector<16x128xi32>
    %1 = tpu.iota {dimensions = array<i32: 1>} : vector<16x128xi32>
    %c16_i32 = arith.constant 16 : i32
    %2 = arith.muli %arg0, %c16_i32 : i32
    %3 = vector.broadcast %2 : i32 to vector<16x128xi32>
    %4 = arith.addi %3, %0 : vector<16x128xi32>
    %c128_i32 = arith.constant 128 : i32
    %5 = vector.broadcast %c128_i32 : i32 to vector<16x128xi32>
    %6 = arith.muli %4, %5 : vector<16x128xi32>
    %7 = arith.addi %6, %1 : vector<16x128xi32>
    %c0 = arith.constant 0 : index
    %8 = memref.load %arg1[%c0] : memref<1xi32, #tpu.memory_space<smem>>
    %9 = vector.broadcast %8 : i32 to vector<16x128xi32>
    %10 = arith.addi %7, %9 : vector<16x128xi32>
    %c16_i32_0 = arith.constant 16 : i32
    %11 = vector.broadcast %c16_i32_0 : i32 to vector<16x128xi32>
    %12 = arith.shrui %10, %11 : vector<16x128xi32>
    %13 = arith.xori %10, %12 : vector<16x128xi32>
    %c2146121005_i32 = arith.constant 2146121005 : i32
    %14 = vector.broadcast %c2146121005_i32 : i32 to vector<16x128xi32>
    %15 = arith.muli %13, %14 : vector<16x128xi32>
    %c15_i32 = arith.constant 15 : i32
    %16 = vector.broadcast %c15_i32 : i32 to vector<16x128xi32>
    %17 = arith.shrui %15, %16 : vector<16x128xi32>
    %18 = arith.xori %15, %17 : vector<16x128xi32>
    %c-2073254261_i32 = arith.constant -2073254261 : i32
    %19 = vector.broadcast %c-2073254261_i32 : i32 to vector<16x128xi32>
    %20 = arith.muli %18, %19 : vector<16x128xi32>
    %c16_i32_1 = arith.constant 16 : i32
    %21 = vector.broadcast %c16_i32_1 : i32 to vector<16x128xi32>
    %22 = arith.shrui %20, %21 : vector<16x128xi32>
    %23 = arith.xori %20, %22 : vector<16x128xi32>
    %c9_i32 = arith.constant 9 : i32
    %24 = vector.broadcast %c9_i32 : i32 to vector<16x128xi32>
    %25 = arith.shrui %23, %24 : vector<16x128xi32>
    %c1065353216_i32 = arith.constant 1065353216 : i32
    %26 = vector.broadcast %c1065353216_i32 : i32 to vector<16x128xi32>
    %27 = arith.ori %25, %26 : vector<16x128xi32>
    %28 = tpu.bitcast %27 : vector<16x128xi32> -> vector<16x128xf32>
    %cst = arith.constant 1.000000e+00 : f32
    %29 = vector.broadcast %cst : f32 to vector<16x128xf32>
    %30 = arith.subf %28, %29 : vector<16x128xf32>
    %c0_2 = arith.constant 0 : index
    %c0_3 = arith.constant 0 : index
    %31 = vector.load %arg2[%c0_2, %c0_3] : memref<16x128xf32, #tpu.memory_space<vmem>>, vector<16x128xf32>
    %cst_4 = arith.constant 1.000000e+00 : f32
    %32 = vector.broadcast %cst_4 : f32 to vector<16x128xf32>
    %33 = arith.mulf %30, %32 : vector<16x128xf32>
    %34 = math.absf %31 : vector<16x128xf32>
    %35 = arith.cmpf ole, %33, %34 : vector<16x128xf32>
    %cst_5 = arith.constant 0.000000e+00 : f32
    %36 = vector.broadcast %cst_5 : f32 to vector<16x128xf32>
    %37 = arith.cmpf ogt, %31, %36 : vector<16x128xf32>
    %cst_6 = arith.constant 0.000000e+00 : f32
    %38 = vector.broadcast %cst_6 : f32 to vector<16x128xf32>
    %39 = arith.cmpf olt, %31, %38 : vector<16x128xf32>
    %cst_7 = arith.constant -1.000000e+00 : f32
    %cst_8 = arith.constant 0.000000e+00 : f32
    %40 = vector.broadcast %cst_7 : f32 to vector<16x128xf32>
    %41 = vector.broadcast %cst_8 : f32 to vector<16x128xf32>
    %42 = arith.select %39, %40, %41 : vector<16x128xi1>, vector<16x128xf32>
    %cst_9 = arith.constant 1.000000e+00 : f32
    %43 = vector.broadcast %cst_9 : f32 to vector<16x128xf32>
    %44 = arith.select %37, %43, %42 : vector<16x128xi1>, vector<16x128xf32>
    %cst_10 = arith.constant 0.000000e+00 : f32
    %45 = vector.broadcast %cst_10 : f32 to vector<16x128xf32>
    %46 = arith.select %35, %44, %45 : vector<16x128xi1>, vector<16x128xf32>
    %c0_11 = arith.constant 0 : index
    %c0_12 = arith.constant 0 : index
    %47 = vector.load %arg3[%c0_11, %c0_12] : memref<16x128xf32, #tpu.memory_space<vmem>>, vector<16x128xf32>
    tpu.vector_store %arg3[%c0_11, %c0_12], %46 {strides = array<i32>} : memref<16x128xf32, #tpu.memory_space<vmem>>, vector<16x128xf32>,
    return
  }
  func.func @transform_0(%arg0: i32, %arg1: memref<1xi32, #tpu.memory_space<smem>>) -> (i32, i32) {
    %c0_i32 = arith.constant 0 : i32
    %c0_i32_0 = arith.constant 0 : i32
    return %arg0, %c0_i32 : i32, i32
  }
  func.func @transform_1(%arg0: i32, %arg1: memref<1xi32, #tpu.memory_space<smem>>) -> (i32, i32) {
    %c0_i32 = arith.constant 0 : i32
    %c0_i32_0 = arith.constant 0 : i32
    return %arg0, %c0_i32 : i32, i32
  }
}

</mosaic_0001>

<llo_original>
// kernel: tpu_custom_call.1
$region0: #{tpu_custom_call.1}
  #allocation0 [shape = 'u32[]', space=smem, size = 0x4, offset = 0x4, fixed_abs, tag = 'smem constant byte address 0x4 - core index']
  #allocation1 [shape = 'u32[72,128]{1,0:T(1,128)}', space=vmem, size = 0x9000, scoped, tag = 'internal scratch']
  #allocation2 [shape = 's32[1]{0}', space=sflag, size = 0x4, scoped, tag = 'scoped memory for tpu_custom_call.1']
  #allocation3 [shape = 's32[1]{0:T(128)S(6)}', space=smem, size = 0x200, scoped, tag = 'prefetched SMEM operand 0']
  %s0 = inlined_call_operand.<no memory space> [shape: s32[1], index: 0, kind: input, shape index: {}]
  %s1 = inlined_call_operand.hbm [shape: f32[16,128], index: 1, kind: input, shape index: {}]
  %s2 = inlined_call_operand.hbm [shape: f32[16,128], index: 2, kind: output, shape index: {}]
  %s3 = sld [smem:[#allocation0]]
  $region18: #{tpu_custom_call.1} parent=0
    _
  %s5 = ssub.s32 1, %s3
  %s6 = scalar_select 0, %s5, %s3
  %7 = sst [smem:[#allocation3]] %s0
  $region1: #{tpu_custom_call.1} parent=0
    #allocation4 [shape = 'u8[8192]{0}', space=vmem, size = 0x2000, scoped, tag = 'input window, operand 1, single buffered']
    #allocation5 [shape = 's32[1]{0}', space=sflag, size = 0x4, scoped, tag = 'scoped memory for tpu_custom_call.1']
    #allocation6 [shape = 's32[1]{0}', space=sflag, size = 0x4, scoped, tag = 'scoped memory for tpu_custom_call.1']
    #allocation7 [shape = 'u8[8192]{0}', space=vmem, size = 0x2000, scoped, tag = 'output window, operand 0, single buffered']
    %8 = vsyncpa [#allocation5], 0
    %9 = vsyncpa [#allocation6], 0
    // Predicated region
    $region2: #{tpu_custom_call.1} parent=1 // pred_check
      _
    $region3: #{tpu_custom_call.1} parent=1 // pred_check_branch
      %11 = sbr.rel (0) target = $region5
    $region4: #{tpu_custom_call.1} parent=1 // pred_region
      %13 = vsyncadd [#allocation5], 0
      %s14 = sshll.u32 %s1, 4
      %s15 = int_to_ptr.hbm [resolvable:$true] %s14
      %s16 = sshll.u32 [#allocation4], 4
      %s17 = int_to_ptr.vmem [resolvable:$true] %s16
      %22 = dma.hbm_to_vmem [thread:$0]  %s15, 256, %s17, [#allocation5], 128, 128, 8
    $region5: #{tpu_custom_call.1} parent=1 // pred_fallthru
      _
    // Predicated region
    $region6: #{tpu_custom_call.1} parent=1 // pred_check
      _
    $region7: #{tpu_custom_call.1} parent=1 // pred_check_branch
      %24 = sbr.rel (0) target = $region9
    $region8: #{tpu_custom_call.1} parent=1 // pred_region
      %26 = dma.done [#allocation5], 256
    $region9: #{tpu_custom_call.1} parent=1 // pred_fallthru
      _
    %v27 = vlaneseq
    %v28 = vshrl.u32 %v27, 7
    %v29 = vadd.s32 %v28, 8
    %v30 = vlaneseq
    %v31 = vand.u32 %v30, 127
    %s32 = smul.u32 0, 16
    %v33 = vstv %s32
    %v34 = vadd.s32 %v33, %v28
    %v35 = vadd.s32 %v33, %v29
    %v36 = vmul.u32 %v34, 128
    %v37 = vmul.u32 %v35, 128
    %v38 = vadd.s32 %v36, %v31
    %v39 = vadd.s32 %v37, %v31
    %s40 = sld [smem:[#allocation3]]
    %v41 = vstv %s40
    %v42 = vadd.s32 %v38, %v41
    %v43 = vadd.s32 %v39, %v41
    %v44 = vshrl.u32 %v42, 16
    %v45 = vshrl.u32 %v43, 16
    %v46 = vxor.u32 %v42, %v44
    %v47 = vxor.u32 %v43, %v45
    %v48 = vmul.u32 %v46, 2146121005
    %v49 = vmul.u32 %v47, 2146121005
    %v50 = vshrl.u32 %v48, 15
    %v51 = vshrl.u32 %v49, 15
    %v52 = vxor.u32 %v48, %v50
    %v53 = vxor.u32 %v49, %v51
    %v54 = vmul.u32 %v52, 2221713035
    %v55 = vmul.u32 %v53, 2221713035
    %v56 = vshrl.u32 %v54, 16
    %v57 = vshrl.u32 %v55, 16
    %v58 = vxor.u32 %v54, %v56
    %v59 = vxor.u32 %v55, %v57
    %v60 = vshrl.u32 %v58, 9
    %v61 = vshrl.u32 %v59, 9
    %v62 = vor.u32 %v60, 1065353216
    %v63 = vor.u32 %v61, 1065353216
    %v66 = vsub.f32 %v62, 1.0
    %v67 = vsub.f32 %v63, 1.0
    %v68 = vld [vmem:[#allocation4] sm:$0xff]
    %v69 = vld [vmem:[#allocation4 + $0x8] sm:$0xff]
    %v70 = vand.u32 2147483647, %v68
    %v71 = vand.u32 2147483647, %v69
    %vm72 = vcmp.le.f32.partialorder %v66, %v70
    %vm73 = vcmp.le.f32.partialorder %v67, %v71
    %vm74 = vcmp.gt.f32.partialorder %v68, 0.0
    %vm75 = vcmp.gt.f32.partialorder %v69, 0.0
    %vm76 = vcmp.lt.f32.partialorder %v68, 0.0
    %vm77 = vcmp.lt.f32.partialorder %v69, 0.0
    %v78 = vsel %vm76, -1.0, 0.0
    %v79 = vsel %vm77, -1.0, 0.0
    %v80 = vsel %vm74, 1.0, %v78
    %v81 = vsel %vm75, 1.0, %v79
    %v82 = vsel %vm72, %v80, 0.0
    %v83 = vsel %vm73, %v81, 0.0
    %84 = vst [vmem:[#allocation7] sm:$0xff] %v82
    %85 = vst [vmem:[#allocation7 + $0x8] sm:$0xff] %v83
    // Predicated region
    $region10: #{tpu_custom_call.1} parent=1 // pred_check
      _
    $region11: #{tpu_custom_call.1} parent=1 // pred_check_branch
      %87 = sbr.rel (0) target = $region13
    $region12: #{tpu_custom_call.1} parent=1 // pred_region
      %89 = vsyncadd [#allocation6], 0
      %s90 = sshll.u32 [#allocation7], 4
      %s91 = int_to_ptr.vmem [resolvable:$true] %s90
      %s92 = sshll.u32 %s2, 4
      %s93 = int_to_ptr.hbm [resolvable:$true] %s92
      %98 = dma.vmem_to_hbm [thread:$0]  %s91, 256, %s93, [#allocation6], 128, 128, 8
    $region13: #{tpu_custom_call.1} parent=1 // pred_fallthru
      _
    // Predicated region
    $region14: #{tpu_custom_call.1} parent=1 // pred_check
      _
    $region15: #{tpu_custom_call.1} parent=1 // pred_check_branch
      %100 = sbr.rel (0) target = $region17
    $region16: #{tpu_custom_call.1} parent=1 // pred_region
      %102 = dma.done [#allocation6], 256
    $region17: #{tpu_custom_call.1} parent=1 // pred_fallthru
      _
    %103 = vsyncpa [#allocation5], 1
    %104 = vsyncpa [#allocation6], 1

</llo_original>
